<compile_context>
chip_gen: v7x
topology: tpu7x:2x2x1
jax: 0.10.0
libtpu: 0.0.40
codegen_flags: <defaults>
</compile_context>

<pallas_src>
import functools

import jax
import jax.numpy as jnp
from jax.experimental import pallas as pl
from jax.experimental.pallas import tpu as pltpu


def _round_up(x, m):
    return (x + m - 1) // m * m


def _conv_matmul_kernel(w_ref, p_ref, b_ref, o_ref):
    # w_ref: (C_OUT_PAD, K_PAD)   im2col'd weights
    # p_ref: (K_PAD, TILE_P)      im2col'd input patches (pixels lane-dense)
    # b_ref: (C_OUT_PAD, 1)       bias
    # o_ref: (C_OUT_PAD, TILE_P)
    acc = jnp.dot(w_ref[...], p_ref[...], preferred_element_type=jnp.float32)
    o_ref[...] = (acc + b_ref[...]).astype(o_ref.dtype)


def tudui_forward(x, weight, bias, *, tile_p=256):
    """x: (N, C_in, H, W) f32; weight: (C_out, C_in, KH, KW); bias: (C_out,).

    Equivalent to nn.Conv2d(C_in, C_out, kernel_size=3, stride=1, padding=0).
    """
    n, c_in, h, w = x.shape
    c_out, c_in_w, kh, kw = weight.shape
    assert c_in == c_in_w, "channel mismatch"
    h_out, w_out = h - kh + 1, w - kw + 1  # stride=1, padding=0 (VALID)
    k = c_in * kh * kw                     # 27
    p = n * h_out * w_out                  # total output pixels

    # ---- im2col in the wrapper (layout plumbing; compute stays in the kernel)
    cols = [x[:, :, i:i + h_out, j:j + w_out] for i in range(kh) for j in range(kw)]
    patches = jnp.stack(cols, axis=2)                   # (N, C_in, KH*KW, Ho, Wo)
    patches = patches.reshape(n, k, h_out * w_out)      # (N, K, Ho*Wo)  (c-major, tap-minor)
    patches = patches.transpose(1, 0, 2).reshape(k, p)  # (K, N*Ho*Wo)

    # ---- pad to hardware-friendly shapes
    c_out_pad = _round_up(c_out, 8)        # sublane multiple
    k_pad = _round_up(k, 8)                # contraction dim, sublane multiple
    p_pad = _round_up(p, tile_p)           # lane-dense, multiple of 128

    patches = jnp.pad(patches, ((0, k_pad - k), (0, p_pad - p)))
    w2d = jnp.pad(weight.reshape(c_out, k),
                  ((0, c_out_pad - c_out), (0, k_pad - k)))
    b2d = jnp.pad(bias.reshape(c_out, 1), ((0, c_out_pad - c_out), (0, 0)))

    grid = (p_pad // tile_p,)

    flops = 2 * n * c_out * k * h_out * w_out
    bytes_accessed = 4 * (patches.size + w2d.size + b2d.size + c_out_pad * p_pad)

    out2d = pl.pallas_call(
        _conv_matmul_kernel,
        out_shape=jax.ShapeDtypeStruct((c_out_pad, p_pad), x.dtype),
        grid_spec=pltpu.PrefetchScalarGridSpec(
            num_scalar_prefetch=0,
            grid=grid,
            in_specs=[
                pl.BlockSpec((c_out_pad, k_pad), lambda t: (0, 0)),
                pl.BlockSpec((k_pad, tile_p), lambda t: (0, t)),
                pl.BlockSpec((c_out_pad, 1), lambda t: (0, 0)),
            ],
            out_specs=pl.BlockSpec((c_out_pad, tile_p), lambda t: (0, t)),
        ),
        compiler_params=pltpu.CompilerParams(
            dimension_semantics=("parallel",),
        ),
        cost_estimate=pl.CostEstimate(
            flops=flops, transcendentals=0, bytes_accessed=bytes_accessed),
    )(w2d, patches, b2d)

    # ---- strip padding, back to NCHW
    out = out2d[:c_out, :p].reshape(c_out, n, h_out, w_out)
    return out.transpose(1, 0, 2, 3)


if __name__ == "__main__":
    key = jax.random.PRNGKey(0)
    kx, kw_, kb = jax.random.split(key, 3)

    # Small shapes consistent with the module: Conv2d(3 -> 6, k=3, s=1, p=0).
    N, C_IN, H, W = 2, 3, 16, 16
    C_OUT, KH, KW = 6, 3, 3

    x = jax.random.normal(kx, (N, C_IN, H, W), dtype=jnp.float32)
    # Deterministic synthetic init (mimics PyTorch uniform fan_in bound).
    fan_in = C_IN * KH * KW
    bound = 1.0 / (fan_in ** 0.5)
    weight = jax.random.uniform(kw_, (C_OUT, C_IN, KH, KW), jnp.float32, -bound, bound)
    bias = jax.random.uniform(kb, (C_OUT,), jnp.float32, -bound, bound)

    fwd = jax.jit(functools.partial(tudui_forward, tile_p=256))
    out = jax.block_until_ready(fwd(x, weight, bias))

    # Sanity check vs. XLA's conv (NCHW, OIHW, VALID padding).
    ref = jax.lax.conv_general_dilated(
        x, weight, window_strides=(1, 1), padding="VALID",
        dimension_numbers=("NCHW", "OIHW", "NCHW"),
    ) + bias.reshape(1, C_OUT, 1, 1)
    assert out.shape == (N, C_OUT, H - 2, W - 2)
    assert jnp.allclose(out, ref, atol=1e-4, rtol=1e-4)

    print("KERNEL_OK")
</pallas_src>

<mosaic_0001>
module attributes {stable_mosaic.version = 11 : i64} {
  func.func @_conv_matmul_kernel(%arg0: i32, %arg1: memref<8x32xf32, #tpu.memory_space<vmem>>, %arg2: memref<32x256xf32, #tpu.memory_space<vmem>>, %arg3: memref<8x1xf32, #tpu.memory_space<vmem>>, %arg4: memref<8x256xf32, #tpu.memory_space<vmem>>) attributes {dimension_semantics = [#tpu.dimension_semantics<parallel>], iteration_bounds = array<i64: 2>, scalar_prefetch = 0 : i64, scratch_operands = 0 : i64, tpu.core_type = #tpu.core_type<tc>, window_params = [{pipeline_mode = #tpu.pipeline_mode<synchronous>, transform_indices = @transform_0, window_bounds = array<i64: 8, 32>}, {transform_indices = @transform_1, window_bounds = array<i64: 32, 256>}, {pipeline_mode = #tpu.pipeline_mode<synchronous>, transform_indices = @transform_2, window_bounds = array<i64: 8, 1>}, {transform_indices = @transform_3, window_bounds = array<i64: 8, 256>}]} {
    %c0 = arith.constant 0 : index
    %c0_0 = arith.constant 0 : index
    %0 = vector.load %arg1[%c0, %c0_0] : memref<8x32xf32, #tpu.memory_space<vmem>>, vector<8x32xf32>
    %c0_1 = arith.constant 0 : index
    %c0_2 = arith.constant 0 : index
    %1 = vector.load %arg2[%c0_1, %c0_2] : memref<32x256xf32, #tpu.memory_space<vmem>>, vector<32x256xf32>
    %cst = arith.constant dense<0.000000e+00> : vector<8x256xf32>
    %2 = tpu.matmul %0, %1, %cst {dimension_numbers = #tpu.dot_dimension_numbers<[1], [0], [0], [1], [0, 0, 1, 1], [], []>} : vector<8x32xf32>, vector<32x256xf32>, vector<8x256xf32> -> vector<8x256xf32>
    %c0_3 = arith.constant 0 : index
    %c0_4 = arith.constant 0 : index
    %3 = vector.load %arg3[%c0_3, %c0_4] : memref<8x1xf32, #tpu.memory_space<vmem>>, vector<8x1xf32>
    %4 = vector.broadcast %3 : vector<8x1xf32> to vector<8x256xf32>
    %5 = arith.addf %2, %4 : vector<8x256xf32>
    %c0_5 = arith.constant 0 : index
    %c0_6 = arith.constant 0 : index
    %6 = vector.load %arg4[%c0_5, %c0_6] : memref<8x256xf32, #tpu.memory_space<vmem>>, vector<8x256xf32>
    tpu.vector_store %arg4[%c0_5, %c0_6], %5 {strides = array<i32>} : memref<8x256xf32, #tpu.memory_space<vmem>>, vector<8x256xf32>,
    return
  }
  func.func @transform_0(%arg0: i32) -> (i32, i32) {
    %c0_i32 = arith.constant 0 : i32
    %c0_i32_0 = arith.constant 0 : i32
    %c0_i32_1 = arith.constant 0 : i32
    return %c0_i32, %c0_i32_0 : i32, i32
  }
  func.func @transform_1(%arg0: i32) -> (i32, i32) {
    %c0_i32 = arith.constant 0 : i32
    %c0_i32_0 = arith.constant 0 : i32
    return %c0_i32, %arg0 : i32, i32
  }
  func.func @transform_2(%arg0: i32) -> (i32, i32) {
    %c0_i32 = arith.constant 0 : i32
    %c0_i32_0 = arith.constant 0 : i32
    %c0_i32_1 = arith.constant 0 : i32
    return %c0_i32, %c0_i32_0 : i32, i32
  }
  func.func @transform_3(%arg0: i32) -> (i32, i32) {
    %c0_i32 = arith.constant 0 : i32
    %c0_i32_0 = arith.constant 0 : i32
    return %c0_i32, %arg0 : i32, i32
  }
}

</mosaic_0001>

<llo_original>
// kernel: tudui_forward.1
$region0: #{tudui_forward.1}
  #allocation0 [shape = 'u32[]', space=smem, size = 0x4, offset = 0x4, fixed_abs, tag = 'smem constant byte address 0x4 - core index']
  #allocation1 [shape = 'u32[144,128]{1,0:T(1,128)}', space=vmem, size = 0x12000, scoped, tag = 'internal scratch']
  %s0 = inlined_call_operand.vmem [shape: f32[8,32], index: 0, kind: input, shape index: {}]
  %s1 = inlined_call_operand.vmem [shape: f32[32,512], index: 1, kind: input, shape index: {}]
  %s2 = inlined_call_operand.vmem [shape: f32[8,1], index: 2, kind: input, shape index: {}]
  %s3 = inlined_call_operand.vmem [shape: f32[8,512], index: 3, kind: output, shape index: {}]
  %s4 = sld [smem:[#allocation0]]
  $region68: #{tudui_forward.1} parent=0
    _
  %s6 = ssub.s32 1, %s4
  %s7 = scalar_select 0, %s6, %s4
  $region1: #{tudui_forward.1} parent=0
    #allocation2 [shape = 'u8[65536]{0}', space=vmem, size = 0x10000, scoped, tag = 'input window, operand 1']
    loop: start=0, step=1, limit=4
    $region2: #{tudui_forward.1} parent=1 // loop_pre_header
      _
    $region3: #{tudui_forward.1} parent=1 // loop_header
      %s9 = sphi 0, %s13
      %p10 = scmp.ge.s32.totalorder %s9, 4
      %s17 = sphi 0, %s17
      %s19 = sphi 0, %s17
      %s20 = sphi 0, %s19
      %s34 = sphi 0, %s20
      %s40 = sphi 0, %s42
      %s43 = sphi 0, %s40
      %s44 = sphi 0, %s43
      %s60 = sphi 0, %s44
      %s64 = sphi 0, %s64
      %s66 = sphi 0, %s64
      %s67 = sphi 0, %s66
      %s81 = sphi 0, %s67
      %s87 = sphi 0, %s89
      %s90 = sphi 0, %s87
      %s91 = sphi 0, %s90
      %s107 = sphi 0, %s91
    $region4: #{tudui_forward.1} parent=1 // loop_header_branch
      %12 = sbr.rel (%p10) target = $region8
    $region5: #{tudui_forward.1} parent=1 // loop_body
      %s14 = ssub.s32 %s9, 1
      %s15 = ssub.s32 %s9, 2
      %s16 = sadd.s32 %s9, 1
      %s18 = sadd.s32 %s17, 1
      %p21 = scmp.eq.s32.totalorder %s9, 1
      %p22 = scmp.ne.s32.totalorder %s17, %s19
      %p23 = scmp.eq.s32.totalorder %s9, 0
      %p24 = por %p22, %p23
      %p25 = scmp.ne.s32.totalorder %s17, %s19
      %p26 = scmp.eq.s32.totalorder %s14, 1
      %p27 = por %p25, %p26
      %p28 = scmp.ne.s32.totalorder %s19, %s20
      %p29 = scmp.eq.s32.totalorder %s14, 0
      %p30 = por %p28, %p29
      %p31 = scmp.ne.s32.totalorder %s19, %s20
      %p32 = scmp.eq.s32.totalorder %s15, 1
      %p33 = por %p31, %p32
      %p35 = scmp.ne.s32.totalorder %s20, %s34
      %p36 = scmp.eq.s32.totalorder %s15, 0
      %p37 = por %p35, %p36
      %s38 = ssub.s32 %s9, %s16
      %p39 = scmp.eq.s32.totalorder %s38, 0
      %s41 = sadd.s32 %s40, 1
      %s42 = scalar_select %p39, %s40, %s41
      %p45 = pneg %p39
      %p46 = scmp.eq.s32.totalorder %s9, 1
      %p47 = por %p45, %p46
      %p48 = scmp.ne.s32.totalorder %s40, %s43
      %p49 = scmp.eq.s32.totalorder %s9, 0
      %p50 = por %p48, %p49
      %p51 = scmp.ne.s32.totalorder %s40, %s43
      %p52 = scmp.eq.s32.totalorder %s14, 1
      %p53 = por %p51, %p52
      %p54 = scmp.ne.s32.totalorder %s43, %s44
      %p55 = scmp.eq.s32.totalorder %s14, 0
      %p56 = por %p54, %p55
      %p57 = scmp.ne.s32.totalorder %s43, %s44
      %p58 = scmp.eq.s32.totalorder %s15, 1
      %p59 = por %p57, %p58
      %p61 = scmp.ne.s32.totalorder %s44, %s60
      %p62 = scmp.eq.s32.totalorder %s15, 0
      %p63 = por %p61, %p62
      %s65 = sadd.s32 %s64, 1
      %p68 = scmp.eq.s32.totalorder %s9, 1
      %p69 = scmp.ne.s32.totalorder %s64, %s66
      %p70 = scmp.eq.s32.totalorder %s9, 0
      %p71 = por %p69, %p70
      %p72 = scmp.ne.s32.totalorder %s64, %s66
      %p73 = scmp.eq.s32.totalorder %s14, 1
      %p74 = por %p72, %p73
      %p75 = scmp.ne.s32.totalorder %s66, %s67
      %p76 = scmp.eq.s32.totalorder %s14, 0
      %p77 = por %p75, %p76
      %p78 = scmp.ne.s32.totalorder %s66, %s67
      %p79 = scmp.eq.s32.totalorder %s15, 1
      %p80 = por %p78, %p79
      %p82 = scmp.ne.s32.totalorder %s67, %s81
      %p83 = scmp.eq.s32.totalorder %s15, 0
      %p84 = por %p82, %p83
      %s85 = ssub.s32 %s9, %s16
      %p86 = scmp.eq.s32.totalorder %s85, 0
      %s88 = sadd.s32 %s87, 1
      %s89 = scalar_select %p86, %s87, %s88
      %p92 = pneg %p86
      %p93 = scmp.eq.s32.totalorder %s9, 1
      %p94 = por %p92, %p93
      %p95 = scmp.ne.s32.totalorder %s87, %s90
      %p96 = scmp.eq.s32.totalorder %s9, 0
      %p97 = por %p95, %p96
      %p98 = scmp.ne.s32.totalorder %s87, %s90
      %p99 = scmp.eq.s32.totalorder %s14, 1
      %p100 = por %p98, %p99
      %p101 = scmp.ne.s32.totalorder %s90, %s91
      %p102 = scmp.eq.s32.totalorder %s14, 0
      %p103 = por %p101, %p102
      %p104 = scmp.ne.s32.totalorder %s90, %s91
      %p105 = scmp.eq.s32.totalorder %s15, 1
      %p106 = por %p104, %p105
      %p108 = scmp.ne.s32.totalorder %s91, %s107
      %p109 = scmp.eq.s32.totalorder %s15, 0
      %p110 = por %p108, %p109
      %p111 = scmp.le.s32.totalorder 1, %s9
      %p112 = scmp.lt.s32.totalorder %s9, 3
      %p113 = pnand %p111, %p112
      %p114 = pneg %p113
      // Predicated region
      $region9: #{tudui_forward.1} parent=5 // pred_check
        _
      $region10: #{tudui_forward.1} parent=5 // pred_check_branch
        %116 = sbr.rel (%p113) target = $region12
      $region11: #{tudui_forward.1} parent=5 // pred_region
        %s117 = ssub.s32 %s9, 1
        // Predicated region
        $region13: #{tudui_forward.1} parent=11 // pred_check
          %p118 = pneg %p30
        $region14: #{tudui_forward.1} parent=11 // pred_check_branch
          %120 = sbr.rel (%p118) target = $region16
        $region15: #{tudui_forward.1} parent=11 // pred_region
          _
        $region16: #{tudui_forward.1} parent=11 // pred_fallthru
          _
        // Predicated region
        $region17: #{tudui_forward.1} parent=11 // pred_check
          %p121 = pneg %p77
        $region18: #{tudui_forward.1} parent=11 // pred_check_branch
          %123 = sbr.rel (%p121) target = $region20
        $region19: #{tudui_forward.1} parent=11 // pred_region
          _
        $region20: #{tudui_forward.1} parent=11 // pred_fallthru
          _
      $region12: #{tudui_forward.1} parent=5 // pred_fallthru
        _
      %p124 = scmp.lt.s32.totalorder %s9, 2
      // Predicated region
      $region21: #{tudui_forward.1} parent=5 // pred_check
        %p125 = pneg %p124
      $region22: #{tudui_forward.1} parent=5 // pred_check_branch
        %127 = sbr.rel (%p125) target = $region24
      $region23: #{tudui_forward.1} parent=5 // pred_region
        // Predicated region
        $region25: #{tudui_forward.1} parent=23 // pred_check
          %p128 = pneg %p50
        $region26: #{tudui_forward.1} parent=23 // pred_check_branch
          %130 = sbr.rel (%p128) target = $region28
        $region27: #{tudui_forward.1} parent=23 // pred_region
          %s131 = sand.u32 %s40, 1
          %s132 = sand.u32 %s40, 1
          %s133 = smul.addr %s132, 64
          %s134 = scalar_lea.vmem [#allocation2], %s133
          %s135 = smul.u32 2, %s9
          %s136 = smul.addr %s135, 8
          %s137 = scalar_lea.vmem %s1, %s136
          // Predicated region
          $region29: #{tudui_forward.1} parent=27 // pred_check
            _
          $region30: #{tudui_forward.1} parent=27 // pred_check_branch
            %139 = sbr.rel (0) target = $region32
          $region31: #{tudui_forward.1} parent=27 // pred_region
            // Predicated region
            $region33: #{tudui_forward.1} parent=31 // pred_check
              _
            $region34: #{tudui_forward.1} parent=31 // pred_check_branch
              %141 = sbr.rel (0) target = $region36
            $region35: #{tudui_forward.1} parent=31 // pred_region
              loop: start=0, step=1, limit=1
              $region37: #{tudui_forward.1} parent=35 // loop_pre_header
                _
              $region38: #{tudui_forward.1} parent=35 // loop_header
                %s143 = sphi 0, %s147
                %p144 = scmp.ge.s32.totalorder %s143, 1
                %s148 = sphi %s137, %s137
                %s149 = sphi %s134, %s134
              $region39: #{tudui_forward.1} parent=35 // loop_header_branch
                %146 = sbr.rel (%p144) target = $region43
              $region40: #{tudui_forward.1} parent=35 // loop_body
                %v150 = vld [vmem:[%s148] sm:$0xff]
                %151 = vst [vmem:[%s149] sm:$0xff] %v150
                %v152 = vld [vmem:[%s148 + $0x8] sm:$0xff]
                %153 = vst [vmem:[%s149 + $0x8] sm:$0xff] %v152
                %v154 = vld [vmem:[%s148 + $0x20] sm:$0xff]
                %155 = vst [vmem:[%s149 + $0x10] sm:$0xff] %v154
                %v156 = vld [vmem:[%s148 + $0x28] sm:$0xff]
                %157 = vst [vmem:[%s149 + $0x18] sm:$0xff] %v156
                %v158 = vld [vmem:[%s148 + $0x40] sm:$0xff]
                %159 = vst [vmem:[%s149 + $0x20] sm:$0xff] %v158
                %v160 = vld [vmem:[%s148 + $0x48] sm:$0xff]
                %161 = vst [vmem:[%s149 + $0x28] sm:$0xff] %v160
                %v162 = vld [vmem:[%s148 + $0x60] sm:$0xff]
                %163 = vst [vmem:[%s149 + $0x30] sm:$0xff] %v162
                %v164 = vld [vmem:[%s148 + $0x68] sm:$0xff]
                %165 = vst [vmem:[%s149 + $0x38] sm:$0xff] %v164
              $region41: #{tudui_forward.1} parent=35 // loop_footer
                %s147 = sadd.s32 1, %s143
              $region42: #{tudui_forward.1} parent=35 // loop_footer_branch
                %142 = sbr.rel target = $region38
              $region43: #{tudui_forward.1} parent=35 // loop_exit
                _
            $region36: #{tudui_forward.1} parent=31 // pred_fallthru
              _
            // Predicated region
            $region44: #{tudui_forward.1} parent=31 // pred_check
              _
            $region45: #{tudui_forward.1} parent=31 // pred_check_branch
              %167 = sbr.rel target = $region47
            $region46: #{tudui_forward.1} parent=31 // pred_region
              _
            $region47: #{tudui_forward.1} parent=31 // pred_fallthru
              _
          $region32: #{tudui_forward.1} parent=27 // pred_fallthru
            _
          %168 = vnop
        $region28: #{tudui_forward.1} parent=23 // pred_fallthru
          _
      $region24: #{tudui_forward.1} parent=5 // pred_fallthru
        _
      %p169 = scmp.le.s32.totalorder 1, %s9
      %p170 = scmp.lt.s32.totalorder %s9, 3
      %p171 = pnand %p169, %p170
      %p172 = pneg %p171
      // Predicated region
      $region48: #{tudui_forward.1} parent=5 // pred_check
        _
      $region49: #{tudui_forward.1} parent=5 // pred_check_branch
        %174 = sbr.rel (%p171) target = $region51
      $region50: #{tudui_forward.1} parent=5 // pred_region
        %s175 = ssub.s32 %s9, 1
        %s176 = sand.u32 %s43, 1
        %s177 = sand.u32 %s43, 1
        %s178 = smul.addr %s177, 64
        %s179 = scalar_lea.vmem [#allocation2], %s178
        // Predicated region
        $region52: #{tudui_forward.1} parent=50 // pred_check
          %p180 = pneg %p56
        $region53: #{tudui_forward.1} parent=50 // pred_check_branch
          %182 = sbr.rel (%p180) target = $region55
        $region54: #{tudui_forward.1} parent=50 // pred_region
          _
        $region55: #{tudui_forward.1} parent=50 // pred_fallthru
          _
        %p183 = pneg %p30
        %p184 = pneg %p27
        %s185 = sand.u32 %s43, 1
        %s186 = sand.u32 %s43, 1
        %s187 = smul.addr %s186, 64
        %s188 = scalar_lea.vmem [#allocation2], %s187
        %p189 = pneg %p56
        %p190 = pneg %p53
        %p191 = pneg %p77
        %p192 = pneg %p74
        %p193 = pneg %p103
        %p194 = pneg %p100
        %s195 = smul.u32 2, %s14
        %p196 = scmp.lt.s32.totalorder %s195, 3
        %s197 = scalar_select %p196, %s195, 3
        %s198 = smul.addr %s197, 8
        %s199 = scalar_lea.vmem %s3, %s198
        %s200 = smul.u32 2, %s14
        %s201 = smul.u32 2, %s14
        %p202 = scmp.lt.s32.totalorder %s201, 3
        %s203 = scalar_select %p202, %s201, 3
        %s204 = smul.addr %s203, 8
        %s205 = scalar_lea.vmem %s3, %s204
        %s206 = smul.u32 2, %s14
        %v207 = vld [vmem:[%s0] sm:$0xff]
        %v208 = vld [vmem:[%s179] sm:$0xff]
        %v209 = vld [vmem:[%s179 + $0x8] sm:$0xff]
        %v210 = vld [vmem:[%s179 + $0x10] sm:$0xff]
        %v211 = vld [vmem:[%s179 + $0x18] sm:$0xff]
        %v212 = vld [vmem:[%s179 + $0x20] sm:$0xff]
        %v213 = vld [vmem:[%s179 + $0x28] sm:$0xff]
        %v214 = vld [vmem:[%s179 + $0x30] sm:$0xff]
        %v215 = vld [vmem:[%s179 + $0x38] sm:$0xff]
        %v216 = vld [vmem:[%s2] sm:$0xff]
        %218 = vset.pattern.permute.xlu0 0
        %219 = vperm.xlu0 %218, %v216
        %v220 = vpop.permute.xlu0 %219
        %vm222 = vcmask 261120
        %v224 = vsel %vm222, %v207, 0
        %226 = vmatprep.subr.mxu0 %v209
        %227 = vmatpush1.msra.mxu0 %v208
        %228 = vmatprep.subr.mxu0 %v211
        %229 = vmatpush1.msra.mxu0 %v210
        %230 = vmatprep.subr.mxu0 %v213
        %231 = vmatpush1.msra.mxu0 %v212
        %232 = vmatprep.subr.mxu0 %v215
        %233 = vmatpush1.msra.mxu0 %v214
        %234 = vmatprep.subr.mxu0 0.0
        %235 = vmatpush1.msra.mxu0 0.0
        %236 = vmatprep.subr.mxu0 0.0
        %237 = vmatpush1.msra.mxu0 0.0
        %238 = vmatprep.subr.mxu0 0.0
        %239 = vmatpush1.msra.mxu0 0.0
        %240 = vmatprep.subr.mxu0 0.0
        %241 = vmatpush1.msra.mxu0 0.0
        %242 = vmatprep.subr.mxu0 0.0
        %243 = vmatpush1.msra.mxu0 0.0
        %244 = vmatprep.subr.mxu0 0.0
        %245 = vmatpush1.msra.mxu0 0.0
        %246 = vmatprep.subr.mxu0 0.0
        %247 = vmatpush1.msra.mxu0 0.0
        %248 = vmatprep.subr.mxu0 0.0
        %249 = vmatpush1.msra.mxu0 0.0
        %250 = vmatprep.subr.mxu0 0.0
        %251 = vmatpush1.msra.mxu0 0.0
        %252 = vmatprep.subr.mxu0 0.0
        %253 = vmatpush1.msra.mxu0 0.0
        %254 = vmatprep.subr.mxu0 0.0
        %255 = vmatpush1.msra.mxu0 0.0
        %256 = vmatprep.subr.mxu0 0.0
        %257 = vmatpush1.msra.mxu0 0.0
        %258 = vmatprep.subr.mxu0 0.0
        %259 = vmatpush1.msra.mxu0 0.0
        %260 = vmatprep.subr.mxu0 0.0
        %261 = vmatpush1.msra.mxu0 0.0
        %262 = vmatprep.subr.mxu0 0.0
        %263 = vmatpush1.msra.mxu0 0.0
        %264 = vmatprep.subr.mxu0 0.0
        %265 = vmatpush1.msra.mxu0 0.0
        %266 = vmatprep.subr.mxu0 0.0
        %267 = vmatpush1.msra.mxu0 0.0
        %268 = vmatprep.subr.mxu0 0.0
        %269 = vmatpush1.msra.mxu0 0.0
        %270 = vmatprep.subr.mxu0 0.0
        %271 = vmatpush1.msra.mxu0 0.0
        %272 = vmatprep.subr.mxu0 0.0
        %273 = vmatpush1.msra.mxu0 0.0
        %274 = vmatprep.subr.mxu0 0.0
        %275 = vmatpush1.msra.mxu0 0.0
        %276 = vmatprep.subr.mxu0 0.0
        %277 = vmatpush1.msra.mxu0 0.0
        %278 = vmatprep.subr.mxu0 0.0
        %279 = vmatpush1.msra.mxu0 0.0
        %280 = vmatprep.subr.mxu0 0.0
        %281 = vmatpush1.msra.mxu0 0.0
        %282 = vmatprep.subr.mxu0 0.0
        %283 = vmatpush1.msra.mxu0 0.0
        %284 = vmatprep.subr.mxu0 0.0
        %285 = vmatpush1.msra.mxu0 0.0
        %286 = vmatprep.subr.mxu0 0.0
        %287 = vmatpush1.msra.mxu0 0.0
        %288 = vmatprep.subr.mxu0 0.0
        %289 = vmatpush1.msra.mxu0 0.0
        %290 = vmatprep.mubr.f32.mxu0 0.0
        %291 = vmatmul.mubr.f32.gmra.mrb[0].mxu0 %v224
        %v292 = vpop.f32.mrb[0].mxu0
        %v293 = vadd.f32 %v220, %v292
        %v294 = vpop.f32.mrb[0].mxu0
        %v295 = vadd.f32 %v220, %v294
        %296 = vdwg.mxu0
        %297 = vst [vmem:[%s205] sm:$0xff] %v293
        %298 = vst [vmem:[%s205 + $0x8] sm:$0xff] %v295
        %s299 = smul.u32 2, %s14
        %p300 = scmp.lt.s32.totalorder %s299, 3
        %s301 = scalar_select %p300, %s299, 3
        %s302 = smul.addr %s301, 8
        %s303 = scalar_lea.vmem %s3, %s302
        // Predicated region
        $region56: #{tudui_forward.1} parent=50 // pred_check
          %p304 = pneg %p100
        $region57: #{tudui_forward.1} parent=50 // pred_check_branch
          %306 = sbr.rel (%p304) target = $region59
        $region58: #{tudui_forward.1} parent=50 // pred_region
          %s307 = smul.u32 2, %s14
        $region59: #{tudui_forward.1} parent=50 // pred_fallthru
          _
      $region51: #{tudui_forward.1} parent=5 // pred_fallthru
        _
      %p308 = scmp.le.s32.totalorder 2, %s9
      // Predicated region
      $region60: #{tudui_forward.1} parent=5 // pred_check
        %p309 = pneg %p308
      $region61: #{tudui_forward.1} parent=5 // pred_check_branch
        %311 = sbr.rel (%p309) target = $region63
      $region62: #{tudui_forward.1} parent=5 // pred_region
        %s312 = ssub.s32 %s9, 2
        // Predicated region
        $region64: #{tudui_forward.1} parent=62 // pred_check
          %p313 = pneg %p106
        $region65: #{tudui_forward.1} parent=62 // pred_check_branch
          %315 = sbr.rel (%p313) target = $region67
        $region66: #{tudui_forward.1} parent=62 // pred_region
          %s316 = smul.u32 2, %s15
          %p317 = scmp.lt.s32.totalorder %s316, 3
          %s318 = scalar_select %p317, %s316, 3
          %s319 = smul.addr %s318, 8
          %s320 = scalar_lea.vmem %s3, %s319
        $region67: #{tudui_forward.1} parent=62 // pred_fallthru
          _
      $region63: #{tudui_forward.1} parent=5 // pred_fallthru
        _
    $region6: #{tudui_forward.1} parent=1 // loop_footer
      %s13 = sadd.s32 1, %s9
    $region7: #{tudui_forward.1} parent=1 // loop_footer_branch
      %8 = sbr.rel target = $region3
    $region8: #{tudui_forward.1} parent=1 // loop_exit
      _

</llo_original>
